<compile_context>
chip_gen: v7x
topology: tpu7x:2x2x1
jax: 0.10.0
libtpu: 0.0.40
codegen_flags: <defaults>
</compile_context>

<pallas_src>
import functools

import jax
import jax.numpy as jnp
from jax.experimental import pallas as pl
from jax.experimental.pallas import tpu as pltpu


# --------------------------------------------------------------------------
# Kernel
# --------------------------------------------------------------------------
def gen_message_kernel(vs_ref, ei_ref, wa_ref, ba_ref, wb_ref, bb_ref,
                       wc_ref, bc_ref, out_ref, *, nb_mlp_layer):
    # MLP A: nb_mlp_layer x (Linear + ReLU) on packed (T, P*E) rows.
    x = ei_ref[...]                                            # (T, P*E) f32
    for l in range(nb_mlp_layer):                              # static unroll
        x = jnp.dot(x.astype(jnp.bfloat16), wa_ref[l],
                    preferred_element_type=jnp.float32) + ba_ref[l]
        x = jnp.maximum(x, 0.0)                                # ReLU (f32)

    # Separate block-diagonal B / C projections: both outputs are lane-aligned
    # full-width rows (no lane slicing / cross-lane shuffles in the epilogue).
    xb = x.astype(jnp.bfloat16)
    scale = jax.nn.sigmoid(
        jnp.dot(xb, wb_ref[...], preferred_element_type=jnp.float32) + bb_ref[...])
    shift = jnp.dot(xb, wc_ref[...], preferred_element_type=jnp.float32) + bc_ref[...]

    # msg = scale * Vs + shift
    out_ref[...] = scale * vs_ref[...] + shift


# --------------------------------------------------------------------------
# Wrapper
# --------------------------------------------------------------------------
def _default_pack():
    """Edges packed per row: 8 on v6e/v7x (256-wide MXU), 4 elsewhere."""
    try:
        kind = jax.devices()[0].device_kind.lower()
    except Exception:
        return 4
    if "v6" in kind or "v7" in kind:
        return 8
    return 4


def _choose_tile_rows(n_rows, pack):
    """~16K edges per grid step (amortizes ~0.35us/step overhead) while
    keeping >=2 grid steps so both v7x TensorCores get work."""
    t = max(16384 // pack, 8)
    while t > 8 and 2 * t > n_rows:
        t //= 2
    return max(t, 8)


def gen_message(Vs, Ei, params, *, nb_mlp_layer, pack=None, tile_rows=None,
                edge_feature=True):
    """Pallas implementation of GenMessage.forward.

    Vs: (N, node_dim) float32 -- source-node features gathered per edge
    Ei: (N, edge_dim) float32 -- edge features
    """
    if not edge_feature:
        return Vs

    N, node_dim = Vs.shape
    _, edge_dim = Ei.shape
    wa, ba, wb, bb, wc, bc = params
    L = nb_mlp_layer
    assert wa.shape == (L, edge_dim, edge_dim)

    if pack is None:
        pack = _default_pack()

    # Only pad the edge count to a `pack` multiple (<= pack-1 rows) when N is
    # ragged.  The tile dimension itself is NOT padded: Pallas masks the
    # partial last block (rows are independent, so padded garbage cannot
    # contaminate valid rows).
    n_pad = pl.cdiv(N, pack) * pack
    if n_pad != N:
        Vs = jnp.pad(Vs, ((0, n_pad - N), (0, 0)))
        Ei = jnp.pad(Ei, ((0, n_pad - N), (0, 0)))
    npk = n_pad // pack

    # Lane-dense packing: `pack` edges per row (row-major reshape).
    Vs_p = Vs.reshape(npk, pack * node_dim)
    Ei_p = Ei.reshape(npk, pack * edge_dim)

    # Block-diagonal weights: each packed segment sees the original layer.
    eyeP = jnp.eye(pack, dtype=jnp.float32)
    wa_p = jax.vmap(lambda w: jnp.kron(eyeP, w))(wa).astype(jnp.bfloat16)  # (L, P*E, P*E)
    wb_p = jnp.kron(eyeP, wb).astype(jnp.bfloat16)                         # (P*E, P*D)
    wc_p = jnp.kron(eyeP, wc).astype(jnp.bfloat16)                         # (P*E, P*D)
    ba_p = jnp.tile(ba, (1, 1, pack))                                      # (L, 1, P*E) f32
    bb_p = jnp.tile(bb, (1, pack))                                         # (1, P*D)  f32
    bc_p = jnp.tile(bc, (1, pack))                                         # (1, P*D)  f32

    if tile_rows is None:
        tile_rows = _choose_tile_rows(npk, pack)
    grid = (pl.cdiv(npk, tile_rows),)

    PE, PD = pack * edge_dim, pack * node_dim
    kernel = functools.partial(gen_message_kernel, nb_mlp_layer=L)

    out_p = pl.pallas_call(
        kernel,
        out_shape=jax.ShapeDtypeStruct((npk, PD), jnp.float32),
        grid_spec=pltpu.PrefetchScalarGridSpec(
            num_scalar_prefetch=0,
            grid=grid,
            in_specs=[
                pl.BlockSpec((tile_rows, PD), lambda i: (i, 0)),     # Vs packed
                pl.BlockSpec((tile_rows, PE), lambda i: (i, 0)),     # Ei packed
                pl.BlockSpec((L, PE, PE), lambda i: (0, 0, 0)),      # Wa block-diag (bf16)
                pl.BlockSpec((L, 1, PE), lambda i: (0, 0, 0)),       # ba tiled
                pl.BlockSpec((PE, PD), lambda i: (0, 0)),            # Wb block-diag (bf16)
                pl.BlockSpec((1, PD), lambda i: (0, 0)),             # bb tiled
                pl.BlockSpec((PE, PD), lambda i: (0, 0)),            # Wc block-diag (bf16)
                pl.BlockSpec((1, PD), lambda i: (0, 0)),             # bc tiled
            ],
            out_specs=pl.BlockSpec((tile_rows, PD), lambda i: (i, 0)),
        ),
        compiler_params=pltpu.CompilerParams(
            dimension_semantics=("parallel",),
            vmem_limit_bytes=32 * 1024 * 1024),
    )(Vs_p, Ei_p, wa_p, ba_p, wb_p, bb_p, wc_p, bc_p)

    out = out_p.reshape(n_pad, node_dim)
    return out[:N] if n_pad != N else out


# --------------------------------------------------------------------------
# Deterministic parameter init (weights stored as (in, out), i.e. transposed
# relative to torch.nn.Linear's (out, in) so the kernel computes x @ W + b
# == torch's x @ W.T + b).
# --------------------------------------------------------------------------
def init_params(key, edge_dim, node_dim, nb_mlp_layer):
    keys = jax.random.split(key, 6)
    scale_e = 1.0 / jnp.sqrt(edge_dim)
    wa = jax.random.uniform(keys[0], (nb_mlp_layer, edge_dim, edge_dim),
                            jnp.float32, -scale_e, scale_e)
    ba = jax.random.uniform(keys[1], (nb_mlp_layer, 1, edge_dim),
                            jnp.float32, -scale_e, scale_e)
    wb = jax.random.uniform(keys[2], (edge_dim, node_dim),
                            jnp.float32, -scale_e, scale_e)
    bb = jax.random.uniform(keys[3], (1, node_dim),
                            jnp.float32, -scale_e, scale_e)
    wc = jax.random.uniform(keys[4], (edge_dim, node_dim),
                            jnp.float32, -scale_e, scale_e)
    bc = jax.random.uniform(keys[5], (1, node_dim),
                            jnp.float32, -scale_e, scale_e)
    return wa, ba, wb, bb, wc, bc


# --------------------------------------------------------------------------
# Pure-JAX f32 reference for correctness check
# --------------------------------------------------------------------------
def gen_message_ref(Vs, Ei, params, nb_mlp_layer):
    wa, ba, wb, bb, wc, bc = params
    x = Ei
    for l in range(nb_mlp_layer):
        x = jnp.maximum(x @ wa[l] + ba[l], 0.0)
    scale = jax.nn.sigmoid(x @ wb + bb)
    shift = x @ wc + bc
    return scale * Vs + shift


if __name__ == "__main__":
    # Small shapes consistent with the module:
    #   edge_dim = 32, node_dim = 32, nb_mlp_layer = 2
    edge_dim, node_dim, nb_mlp_layer = 32, 32, 2

    key = jax.random.PRNGKey(0)
    k_vs, k_ei, k_p = jax.random.split(key, 3)
    params = init_params(k_p, edge_dim, node_dim, nb_mlp_layer)

    # Test both the pack-aligned path and the ragged-N (partial block) path.
    for N in (256, 250):
        Vs = jax.random.normal(k_vs, (N, node_dim), jnp.float32)
        Ei = jax.random.normal(k_ei, (N, edge_dim), jnp.float32)

        msg = gen_message(Vs, Ei, params, nb_mlp_layer=nb_mlp_layer)
        msg = jax.block_until_ready(msg)

        ref = gen_message_ref(Vs, Ei, params, nb_mlp_layer)
        assert msg.shape == (N, node_dim)
        # bf16 MXU operands -> looser tolerance vs the pure-f32 reference.
        assert jnp.allclose(msg, ref, atol=5e-2, rtol=5e-2), \
            f"mismatch vs reference for N={N}"

    print("KERNEL_OK")
</pallas_src>

<mosaic_0001>
module attributes {stable_mosaic.version = 11 : i64} {
  func.func @gen_message_kernel(%arg0: i32, %arg1: memref<32x128xf32, #tpu.memory_space<vmem>>, %arg2: memref<32x128xf32, #tpu.memory_space<vmem>>, %arg3: memref<2x128x128xbf16, #tpu.memory_space<vmem>>, %arg4: memref<2x1x128xf32, #tpu.memory_space<vmem>>, %arg5: memref<128x128xbf16, #tpu.memory_space<vmem>>, %arg6: memref<1x128xf32, #tpu.memory_space<vmem>>, %arg7: memref<128x128xbf16, #tpu.memory_space<vmem>>, %arg8: memref<1x128xf32, #tpu.memory_space<vmem>>, %arg9: memref<32x128xf32, #tpu.memory_space<vmem>>) attributes {dimension_semantics = [#tpu.dimension_semantics<parallel>], iteration_bounds = array<i64: 2>, scalar_prefetch = 0 : i64, scratch_operands = 0 : i64, tpu.core_type = #tpu.core_type<tc>, window_params = [{transform_indices = @transform_0, window_bounds = array<i64: 32, 128>}, {transform_indices = @transform_1, window_bounds = array<i64: 32, 128>}, {pipeline_mode = #tpu.pipeline_mode<synchronous>, transform_indices = @transform_2, window_bounds = array<i64: 2, 128, 128>}, {pipeline_mode = #tpu.pipeline_mode<synchronous>, transform_indices = @transform_3, window_bounds = array<i64: 2, 1, 128>}, {pipeline_mode = #tpu.pipeline_mode<synchronous>, transform_indices = @transform_4, window_bounds = array<i64: 128, 128>}, {pipeline_mode = #tpu.pipeline_mode<synchronous>, transform_indices = @transform_5, window_bounds = array<i64: 1, 128>}, {pipeline_mode = #tpu.pipeline_mode<synchronous>, transform_indices = @transform_6, window_bounds = array<i64: 128, 128>}, {pipeline_mode = #tpu.pipeline_mode<synchronous>, transform_indices = @transform_7, window_bounds = array<i64: 1, 128>}, {transform_indices = @transform_8, window_bounds = array<i64: 32, 128>}]} {
    %c0 = arith.constant 0 : index
    %c0_0 = arith.constant 0 : index
    %0 = vector.load %arg2[%c0, %c0_0] : memref<32x128xf32, #tpu.memory_space<vmem>>, vector<32x128xf32>
    %1 = arith.truncf %0 : vector<32x128xf32> to vector<32x128xbf16>
    %c0_1 = arith.constant 0 : index
    %c0_2 = arith.constant 0 : index
    %c0_3 = arith.constant 0 : index
    %2 = vector.load %arg3[%c0_1, %c0_2, %c0_3] : memref<2x128x128xbf16, #tpu.memory_space<vmem>>, vector<1x128x128xbf16>
    %3 = vector.shape_cast %2 : vector<1x128x128xbf16> to vector<128x128xbf16>
    %cst = arith.constant dense<0.000000e+00> : vector<32x128xf32>
    %4 = tpu.matmul %1, %3, %cst {dimension_numbers = #tpu.dot_dimension_numbers<[1], [0], [0], [1], [0, 0, 1, 1], [], []>} : vector<32x128xbf16>, vector<128x128xbf16>, vector<32x128xf32> -> vector<32x128xf32>
    %c0_4 = arith.constant 0 : index
    %c0_5 = arith.constant 0 : index
    %c0_6 = arith.constant 0 : index
    %5 = vector.load %arg4[%c0_4, %c0_5, %c0_6] : memref<2x1x128xf32, #tpu.memory_space<vmem>>, vector<1x1x128xf32>
    %6 = vector.shape_cast %5 : vector<1x1x128xf32> to vector<1x128xf32>
    %7 = vector.broadcast %6 : vector<1x128xf32> to vector<32x128xf32>
    %8 = arith.addf %4, %7 : vector<32x128xf32>
    %cst_7 = arith.constant 0.000000e+00 : f32
    %9 = vector.broadcast %cst_7 : f32 to vector<32x128xf32>
    %10 = arith.maximumf %8, %9 : vector<32x128xf32>
    %11 = arith.truncf %10 : vector<32x128xf32> to vector<32x128xbf16>
    %c1 = arith.constant 1 : index
    %c0_8 = arith.constant 0 : index
    %c0_9 = arith.constant 0 : index
    %12 = vector.load %arg3[%c1, %c0_8, %c0_9] : memref<2x128x128xbf16, #tpu.memory_space<vmem>>, vector<1x128x128xbf16>
    %13 = vector.shape_cast %12 : vector<1x128x128xbf16> to vector<128x128xbf16>
    %cst_10 = arith.constant dense<0.000000e+00> : vector<32x128xf32>
    %14 = tpu.matmul %11, %13, %cst_10 {dimension_numbers = #tpu.dot_dimension_numbers<[1], [0], [0], [1], [0, 0, 1, 1], [], []>} : vector<32x128xbf16>, vector<128x128xbf16>, vector<32x128xf32> -> vector<32x128xf32>
    %c1_11 = arith.constant 1 : index
    %c0_12 = arith.constant 0 : index
    %c0_13 = arith.constant 0 : index
    %15 = vector.load %arg4[%c1_11, %c0_12, %c0_13] : memref<2x1x128xf32, #tpu.memory_space<vmem>>, vector<1x1x128xf32>
    %16 = vector.shape_cast %15 : vector<1x1x128xf32> to vector<1x128xf32>
    %17 = vector.broadcast %16 : vector<1x128xf32> to vector<32x128xf32>
    %18 = arith.addf %14, %17 : vector<32x128xf32>
    %cst_14 = arith.constant 0.000000e+00 : f32
    %19 = vector.broadcast %cst_14 : f32 to vector<32x128xf32>
    %20 = arith.maximumf %18, %19 : vector<32x128xf32>
    %21 = arith.truncf %20 : vector<32x128xf32> to vector<32x128xbf16>
    %c0_15 = arith.constant 0 : index
    %c0_16 = arith.constant 0 : index
    %22 = vector.load %arg5[%c0_15, %c0_16] : memref<128x128xbf16, #tpu.memory_space<vmem>>, vector<128x128xbf16>
    %cst_17 = arith.constant dense<0.000000e+00> : vector<32x128xf32>
    %23 = tpu.matmul %21, %22, %cst_17 {dimension_numbers = #tpu.dot_dimension_numbers<[1], [0], [0], [1], [0, 0, 1, 1], [], []>} : vector<32x128xbf16>, vector<128x128xbf16>, vector<32x128xf32> -> vector<32x128xf32>
    %c0_18 = arith.constant 0 : index
    %c0_19 = arith.constant 0 : index
    %24 = vector.load %arg6[%c0_18, %c0_19] : memref<1x128xf32, #tpu.memory_space<vmem>>, vector<1x128xf32>
    %25 = vector.broadcast %24 : vector<1x128xf32> to vector<32x128xf32>
    %26 = arith.addf %23, %25 : vector<32x128xf32>
    %27 = arith.negf %26 : vector<32x128xf32>
    %28 = math.exp %27 : vector<32x128xf32>
    %cst_20 = arith.constant 1.000000e+00 : f32
    %29 = vector.broadcast %cst_20 : f32 to vector<32x128xf32>
    %30 = arith.addf %29, %28 : vector<32x128xf32>
    %31 = arith.divf %29, %30 : vector<32x128xf32>
    %c0_21 = arith.constant 0 : index
    %c0_22 = arith.constant 0 : index
    %32 = vector.load %arg7[%c0_21, %c0_22] : memref<128x128xbf16, #tpu.memory_space<vmem>>, vector<128x128xbf16>
    %cst_23 = arith.constant dense<0.000000e+00> : vector<32x128xf32>
    %33 = tpu.matmul %21, %32, %cst_23 {dimension_numbers = #tpu.dot_dimension_numbers<[1], [0], [0], [1], [0, 0, 1, 1], [], []>} : vector<32x128xbf16>, vector<128x128xbf16>, vector<32x128xf32> -> vector<32x128xf32>
    %c0_24 = arith.constant 0 : index
    %c0_25 = arith.constant 0 : index
    %34 = vector.load %arg8[%c0_24, %c0_25] : memref<1x128xf32, #tpu.memory_space<vmem>>, vector<1x128xf32>
    %35 = vector.broadcast %34 : vector<1x128xf32> to vector<32x128xf32>
    %36 = arith.addf %33, %35 : vector<32x128xf32>
    %c0_26 = arith.constant 0 : index
    %c0_27 = arith.constant 0 : index
    %37 = vector.load %arg1[%c0_26, %c0_27] : memref<32x128xf32, #tpu.memory_space<vmem>>, vector<32x128xf32>
    %38 = arith.mulf %31, %37 : vector<32x128xf32>
    %39 = arith.addf %38, %36 : vector<32x128xf32>
    %c0_28 = arith.constant 0 : index
    %c0_29 = arith.constant 0 : index
    %40 = vector.load %arg9[%c0_28, %c0_29] : memref<32x128xf32, #tpu.memory_space<vmem>>, vector<32x128xf32>
    tpu.vector_store %arg9[%c0_28, %c0_29], %39 {strides = array<i32>} : memref<32x128xf32, #tpu.memory_space<vmem>>, vector<32x128xf32>,
    return
  }
  func.func @transform_0(%arg0: i32) -> (i32, i32) {
    %c0_i32 = arith.constant 0 : i32
    %c0_i32_0 = arith.constant 0 : i32
    return %arg0, %c0_i32 : i32, i32
  }
  func.func @transform_1(%arg0: i32) -> (i32, i32) {
    %c0_i32 = arith.constant 0 : i32
    %c0_i32_0 = arith.constant 0 : i32
    return %arg0, %c0_i32 : i32, i32
  }
  func.func @transform_2(%arg0: i32) -> (i32, i32, i32) {
    %c0_i32 = arith.constant 0 : i32
    %c0_i32_0 = arith.constant 0 : i32
    %c0_i32_1 = arith.constant 0 : i32
    %c0_i32_2 = arith.constant 0 : i32
    return %c0_i32, %c0_i32_0, %c0_i32_1 : i32, i32, i32
  }
  func.func @transform_3(%arg0: i32) -> (i32, i32, i32) {
    %c0_i32 = arith.constant 0 : i32
    %c0_i32_0 = arith.constant 0 : i32
    %c0_i32_1 = arith.constant 0 : i32
    %c0_i32_2 = arith.constant 0 : i32
    return %c0_i32, %c0_i32_0, %c0_i32_1 : i32, i32, i32
  }
  func.func @transform_4(%arg0: i32) -> (i32, i32) {
    %c0_i32 = arith.constant 0 : i32
    %c0_i32_0 = arith.constant 0 : i32
    %c0_i32_1 = arith.constant 0 : i32
    return %c0_i32, %c0_i32_0 : i32, i32
  }
  func.func @transform_5(%arg0: i32) -> (i32, i32) {
    %c0_i32 = arith.constant 0 : i32
    %c0_i32_0 = arith.constant 0 : i32
    %c0_i32_1 = arith.constant 0 : i32
    return %c0_i32, %c0_i32_0 : i32, i32
  }
  func.func @transform_6(%arg0: i32) -> (i32, i32) {
    %c0_i32 = arith.constant 0 : i32
    %c0_i32_0 = arith.constant 0 : i32
    %c0_i32_1 = arith.constant 0 : i32
    return %c0_i32, %c0_i32_0 : i32, i32
  }
  func.func @transform_7(%arg0: i32) -> (i32, i32) {
    %c0_i32 = arith.constant 0 : i32
    %c0_i32_0 = arith.constant 0 : i32
    %c0_i32_1 = arith.constant 0 : i32
    return %c0_i32, %c0_i32_0 : i32, i32
  }
  func.func @transform_8(%arg0: i32) -> (i32, i32) {
    %c0_i32 = arith.constant 0 : i32
    %c0_i32_0 = arith.constant 0 : i32
    return %arg0, %c0_i32 : i32, i32
  }
}

</mosaic_0001>

<llo_original>
// kernel: tpu_custom_call.1
$region0: #{tpu_custom_call.1}
  #allocation0 [shape = 'u32[]', space=smem, size = 0x4, offset = 0x4, fixed_abs, tag = 'smem constant byte address 0x4 - core index']
  #allocation1 [shape = 'u32[144,128]{1,0:T(1,128)}', space=vmem, size = 0x12000, scoped, tag = 'internal scratch']
  %s0 = inlined_call_operand.hbm [shape: f32[64,128], index: 0, kind: input, shape index: {}]
  %s1 = inlined_call_operand.hbm [shape: f32[64,128], index: 1, kind: input, shape index: {}]
  %s2 = inlined_call_operand.hbm [shape: bf16[2,128,128], index: 2, kind: input, shape index: {}]
  %s3 = inlined_call_operand.vmem [shape: f32[2,1,128], index: 3, kind: input, shape index: {}]
  %s4 = inlined_call_operand.hbm [shape: bf16[128,128], index: 4, kind: input, shape index: {}]
  %s5 = inlined_call_operand.vmem [shape: f32[1,128], index: 5, kind: input, shape index: {}]
  %s6 = inlined_call_operand.hbm [shape: bf16[128,128], index: 6, kind: input, shape index: {}]
  %s7 = inlined_call_operand.vmem [shape: f32[1,128], index: 7, kind: input, shape index: {}]
  %s8 = inlined_call_operand.hbm [shape: f32[64,128], index: 8, kind: output, shape index: {}]
  %s9 = sld [smem:[#allocation0]]
  $region85: #{tpu_custom_call.1} parent=0
    _
  %s11 = ssub.s32 1, %s9
  %s12 = scalar_select 0, %s11, %s9
  $region1: #{tpu_custom_call.1} parent=0
    #allocation2 [shape = 'u8[32768]{0}', space=vmem, size = 0x8000, scoped, tag = 'input window, operand 0']
    #allocation3 [shape = 's32[2]{0}', space=sflag, size = 0x8, scoped, tag = 'scoped memory for tpu_custom_call.1']
    #allocation4 [shape = 's32[2]{0}', space=sflag, size = 0x8, scoped, tag = 'scoped memory for tpu_custom_call.1']
    #allocation5 [shape = 'u8[32768]{0}', space=vmem, size = 0x8000, scoped, tag = 'input window, operand 1']
    #allocation6 [shape = 's32[2]{0}', space=sflag, size = 0x8, scoped, tag = 'scoped memory for tpu_custom_call.1']
    #allocation7 [shape = 'u8[65536]{0}', space=vmem, size = 0x10000, scoped, tag = 'input window, operand 2, single buffered']
    #allocation8 [shape = 'u8[32768]{0}', space=vmem, size = 0x8000, scoped, tag = 'input window, operand 4, single buffered']
    #allocation9 [shape = 's32[1]{0}', space=sflag, size = 0x4, scoped, tag = 'scoped memory for tpu_custom_call.1']
    #allocation10 [shape = 'u8[32768]{0}', space=vmem, size = 0x8000, scoped, tag = 'input window, operand 6, single buffered']
    #allocation11 [shape = 'u8[32768]{0}', space=vmem, size = 0x8000, scoped, tag = 'output window, operand 0']
    %13 = vsyncpa [#allocation3], 0
    %s14 = scalar_lea.sflag [#allocation3], 1
    %15 = vsyncpa %s14, 0
    %16 = vsyncpa [#allocation6], 0
    %s17 = scalar_lea.sflag [#allocation6], 1
    %18 = vsyncpa %s17, 0
    %19 = vsyncpa [#allocation9], 0
    %20 = vsyncpa [#allocation4], 0
    %s21 = scalar_lea.sflag [#allocation4], 1
    %22 = vsyncpa %s21, 0
    loop: start=0, step=1, limit=4
    $region2: #{tpu_custom_call.1} parent=1 // loop_pre_header
      _
    $region3: #{tpu_custom_call.1} parent=1 // loop_header
      %s24 = sphi 0, %s28
      %p25 = scmp.ge.s32.totalorder %s24, 4
      %s34 = sphi 0, %s36
      %s37 = sphi 0, %s34
      %s38 = sphi 0, %s37
      %s54 = sphi 0, %s38
      %s60 = sphi 0, %s62
      %s63 = sphi 0, %s60
      %s64 = sphi 0, %s63
      %s80 = sphi 0, %s64
      %s84 = sphi 0, %s84
      %s86 = sphi 0, %s84
      %s87 = sphi 0, %s86
      %s101 = sphi 0, %s87
      %s105 = sphi 0, %s105
      %s107 = sphi 0, %s105
      %s108 = sphi 0, %s107
      %s122 = sphi 0, %s108
      %s126 = sphi 0, %s126
      %s128 = sphi 0, %s126
      %s129 = sphi 0, %s128
      %s143 = sphi 0, %s129
      %s147 = sphi 0, %s147
      %s149 = sphi 0, %s147
      %s150 = sphi 0, %s149
      %s164 = sphi 0, %s150
      %s168 = sphi 0, %s168
      %s170 = sphi 0, %s168
      %s171 = sphi 0, %s170
      %s185 = sphi 0, %s171
      %s189 = sphi 0, %s189
      %s191 = sphi 0, %s189
      %s192 = sphi 0, %s191
      %s206 = sphi 0, %s192
      %s212 = sphi 0, %s214
      %s215 = sphi 0, %s212
      %s216 = sphi 0, %s215
      %s232 = sphi 0, %s216
    $region4: #{tpu_custom_call.1} parent=1 // loop_header_branch
      %27 = sbr.rel (%p25) target = $region8
    $region5: #{tpu_custom_call.1} parent=1 // loop_body
      %s29 = ssub.s32 %s24, 1
      %s30 = ssub.s32 %s24, 2
      %s31 = sadd.s32 %s24, 1
      %s32 = ssub.s32 %s24, %s31
      %p33 = scmp.eq.s32.totalorder %s32, 0
      %s35 = sadd.s32 %s34, 1
      %s36 = scalar_select %p33, %s34, %s35
      %p39 = pneg %p33
      %p40 = scmp.eq.s32.totalorder %s24, 1
      %p41 = por %p39, %p40
      %p42 = scmp.ne.s32.totalorder %s34, %s37
      %p43 = scmp.eq.s32.totalorder %s24, 0
      %p44 = por %p42, %p43
      %p45 = scmp.ne.s32.totalorder %s34, %s37
      %p46 = scmp.eq.s32.totalorder %s29, 1
      %p47 = por %p45, %p46
      %p48 = scmp.ne.s32.totalorder %s37, %s38
      %p49 = scmp.eq.s32.totalorder %s29, 0
      %p50 = por %p48, %p49
      %p51 = scmp.ne.s32.totalorder %s37, %s38
      %p52 = scmp.eq.s32.totalorder %s30, 1
      %p53 = por %p51, %p52
      %p55 = scmp.ne.s32.totalorder %s38, %s54
      %p56 = scmp.eq.s32.totalorder %s30, 0
      %p57 = por %p55, %p56
      %s58 = ssub.s32 %s24, %s31
      %p59 = scmp.eq.s32.totalorder %s58, 0
      %s61 = sadd.s32 %s60, 1
      %s62 = scalar_select %p59, %s60, %s61
      %p65 = pneg %p59
      %p66 = scmp.eq.s32.totalorder %s24, 1
      %p67 = por %p65, %p66
      %p68 = scmp.ne.s32.totalorder %s60, %s63
      %p69 = scmp.eq.s32.totalorder %s24, 0
      %p70 = por %p68, %p69
      %p71 = scmp.ne.s32.totalorder %s60, %s63
      %p72 = scmp.eq.s32.totalorder %s29, 1
      %p73 = por %p71, %p72
      %p74 = scmp.ne.s32.totalorder %s63, %s64
      %p75 = scmp.eq.s32.totalorder %s29, 0
      %p76 = por %p74, %p75
      %p77 = scmp.ne.s32.totalorder %s63, %s64
      %p78 = scmp.eq.s32.totalorder %s30, 1
      %p79 = por %p77, %p78
      %p81 = scmp.ne.s32.totalorder %s64, %s80
      %p82 = scmp.eq.s32.totalorder %s30, 0
      %p83 = por %p81, %p82
      %s85 = sadd.s32 %s84, 1
      %p88 = scmp.eq.s32.totalorder %s24, 1
      %p89 = scmp.ne.s32.totalorder %s84, %s86
      %p90 = scmp.eq.s32.totalorder %s24, 0
      %p91 = por %p89, %p90
      %p92 = scmp.ne.s32.totalorder %s84, %s86
      %p93 = scmp.eq.s32.totalorder %s29, 1
      %p94 = por %p92, %p93
      %p95 = scmp.ne.s32.totalorder %s86, %s87
      %p96 = scmp.eq.s32.totalorder %s29, 0
      %p97 = por %p95, %p96
      %p98 = scmp.ne.s32.totalorder %s86, %s87
      %p99 = scmp.eq.s32.totalorder %s30, 1
      %p100 = por %p98, %p99
      %p102 = scmp.ne.s32.totalorder %s87, %s101
      %p103 = scmp.eq.s32.totalorder %s30, 0
      %p104 = por %p102, %p103
      %s106 = sadd.s32 %s105, 1
      %p109 = scmp.eq.s32.totalorder %s24, 1
      %p110 = scmp.ne.s32.totalorder %s105, %s107
      %p111 = scmp.eq.s32.totalorder %s24, 0
      %p112 = por %p110, %p111
      %p113 = scmp.ne.s32.totalorder %s105, %s107
      %p114 = scmp.eq.s32.totalorder %s29, 1
      %p115 = por %p113, %p114
      %p116 = scmp.ne.s32.totalorder %s107, %s108
      %p117 = scmp.eq.s32.totalorder %s29, 0
      %p118 = por %p116, %p117
      %p119 = scmp.ne.s32.totalorder %s107, %s108
      %p120 = scmp.eq.s32.totalorder %s30, 1
      %p121 = por %p119, %p120
      %p123 = scmp.ne.s32.totalorder %s108, %s122
      %p124 = scmp.eq.s32.totalorder %s30, 0
      %p125 = por %p123, %p124
      %s127 = sadd.s32 %s126, 1
      %p130 = scmp.eq.s32.totalorder %s24, 1
      %p131 = scmp.ne.s32.totalorder %s126, %s128
      %p132 = scmp.eq.s32.totalorder %s24, 0
      %p133 = por %p131, %p132
      %p134 = scmp.ne.s32.totalorder %s126, %s128
      %p135 = scmp.eq.s32.totalorder %s29, 1
      %p136 = por %p134, %p135
      %p137 = scmp.ne.s32.totalorder %s128, %s129
      %p138 = scmp.eq.s32.totalorder %s29, 0
      %p139 = por %p137, %p138
      %p140 = scmp.ne.s32.totalorder %s128, %s129
      %p141 = scmp.eq.s32.totalorder %s30, 1
      %p142 = por %p140, %p141
      %p144 = scmp.ne.s32.totalorder %s129, %s143
      %p145 = scmp.eq.s32.totalorder %s30, 0
      %p146 = por %p144, %p145
      %s148 = sadd.s32 %s147, 1
      %p151 = scmp.eq.s32.totalorder %s24, 1
      %p152 = scmp.ne.s32.totalorder %s147, %s149
      %p153 = scmp.eq.s32.totalorder %s24, 0
      %p154 = por %p152, %p153
      %p155 = scmp.ne.s32.totalorder %s147, %s149
      %p156 = scmp.eq.s32.totalorder %s29, 1
      %p157 = por %p155, %p156
      %p158 = scmp.ne.s32.totalorder %s149, %s150
      %p159 = scmp.eq.s32.totalorder %s29, 0
      %p160 = por %p158, %p159
      %p161 = scmp.ne.s32.totalorder %s149, %s150
      %p162 = scmp.eq.s32.totalorder %s30, 1
      %p163 = por %p161, %p162
      %p165 = scmp.ne.s32.totalorder %s150, %s164
      %p166 = scmp.eq.s32.totalorder %s30, 0
      %p167 = por %p165, %p166
      %s169 = sadd.s32 %s168, 1
      %p172 = scmp.eq.s32.totalorder %s24, 1
      %p173 = scmp.ne.s32.totalorder %s168, %s170
      %p174 = scmp.eq.s32.totalorder %s24, 0
      %p175 = por %p173, %p174
      %p176 = scmp.ne.s32.totalorder %s168, %s170
      %p177 = scmp.eq.s32.totalorder %s29, 1
      %p178 = por %p176, %p177
      %p179 = scmp.ne.s32.totalorder %s170, %s171
      %p180 = scmp.eq.s32.totalorder %s29, 0
      %p181 = por %p179, %p180
      %p182 = scmp.ne.s32.totalorder %s170, %s171
      %p183 = scmp.eq.s32.totalorder %s30, 1
      %p184 = por %p182, %p183
      %p186 = scmp.ne.s32.totalorder %s171, %s185
      %p187 = scmp.eq.s32.totalorder %s30, 0
      %p188 = por %p186, %p187
      %s190 = sadd.s32 %s189, 1
      %p193 = scmp.eq.s32.totalorder %s24, 1
      %p194 = scmp.ne.s32.totalorder %s189, %s191
      %p195 = scmp.eq.s32.totalorder %s24, 0
      %p196 = por %p194, %p195
      %p197 = scmp.ne.s32.totalorder %s189, %s191
      %p198 = scmp.eq.s32.totalorder %s29, 1
      %p199 = por %p197, %p198
      %p200 = scmp.ne.s32.totalorder %s191, %s192
      %p201 = scmp.eq.s32.totalorder %s29, 0
      %p202 = por %p200, %p201
      %p203 = scmp.ne.s32.totalorder %s191, %s192
      %p204 = scmp.eq.s32.totalorder %s30, 1
      %p205 = por %p203, %p204
      %p207 = scmp.ne.s32.totalorder %s192, %s206
      %p208 = scmp.eq.s32.totalorder %s30, 0
      %p209 = por %p207, %p208
      %s210 = ssub.s32 %s24, %s31
      %p211 = scmp.eq.s32.totalorder %s210, 0
      %s213 = sadd.s32 %s212, 1
      %s214 = scalar_select %p211, %s212, %s213
      %p217 = pneg %p211
      %p218 = scmp.eq.s32.totalorder %s24, 1
      %p219 = por %p217, %p218
      %p220 = scmp.ne.s32.totalorder %s212, %s215
      %p221 = scmp.eq.s32.totalorder %s24, 0
      %p222 = por %p220, %p221
      %p223 = scmp.ne.s32.totalorder %s212, %s215
      %p224 = scmp.eq.s32.totalorder %s29, 1
      %p225 = por %p223, %p224
      %p226 = scmp.ne.s32.totalorder %s215, %s216
      %p227 = scmp.eq.s32.totalorder %s29, 0
      %p228 = por %p226, %p227
      %p229 = scmp.ne.s32.totalorder %s215, %s216
      %p230 = scmp.eq.s32.totalorder %s30, 1
      %p231 = por %p229, %p230
      %p233 = scmp.ne.s32.totalorder %s216, %s232
      %p234 = scmp.eq.s32.totalorder %s30, 0
      %p235 = por %p233, %p234
      %p236 = scmp.le.s32.totalorder 1, %s24
      %p237 = scmp.lt.s32.totalorder %s24, 3
      %p238 = pnand %p236, %p237
      %p239 = pneg %p238
      // Predicated region
      $region9: #{tpu_custom_call.1} parent=5 // pred_check
        _
      $region10: #{tpu_custom_call.1} parent=5 // pred_check_branch
        %241 = sbr.rel (%p238) target = $region12
      $region11: #{tpu_custom_call.1} parent=5 // pred_region
        %s242 = ssub.s32 %s24, 1
        // Predicated region
        $region13: #{tpu_custom_call.1} parent=11 // pred_check
          %p243 = pneg %p97
        $region14: #{tpu_custom_call.1} parent=11 // pred_check_branch
          %245 = sbr.rel (%p243) target = $region16
        $region15: #{tpu_custom_call.1} parent=11 // pred_region
          %s247 = ssub.s32 2048, 2048
          %248 = vsyncadd [#allocation6], %s247
          %s249 = sshll.u32 [#allocation7], 4
          %s250 = int_to_ptr.vmem [resolvable:$true] %s249
          %255 = dma.hbm_to_vmem [thread:$0]  %s2, 2048, %s250, [#allocation6], 64, 64, 4
        $region16: #{tpu_custom_call.1} parent=11 // pred_fallthru
          _
        // Predicated region
        $region17: #{tpu_custom_call.1} parent=11 // pred_check
          %p256 = pneg %p118
        $region18: #{tpu_custom_call.1} parent=11 // pred_check_branch
          %258 = sbr.rel (%p256) target = $region20
        $region19: #{tpu_custom_call.1} parent=11 // pred_region
          _
        $region20: #{tpu_custom_call.1} parent=11 // pred_fallthru
          _
        // Predicated region
        $region21: #{tpu_custom_call.1} parent=11 // pred_check
          %p259 = pneg %p139
        $region22: #{tpu_custom_call.1} parent=11 // pred_check_branch
          %261 = sbr.rel (%p259) target = $region24
        $region23: #{tpu_custom_call.1} parent=11 // pred_region
          %s263 = ssub.s32 1024, 1024
          %264 = vsyncadd [#allocation9], %s263
          %s265 = sshll.u32 [#allocation8], 4
          %s266 = int_to_ptr.vmem [resolvable:$true] %s265
          %271 = dma.hbm_to_vmem [thread:$0]  %s4, 1024, %s266, [#allocation9], 64, 64, 4
        $region24: #{tpu_custom_call.1} parent=11 // pred_fallthru
          _
        // Predicated region
        $region25: #{tpu_custom_call.1} parent=11 // pred_check
          %p272 = pneg %p160
        $region26: #{tpu_custom_call.1} parent=11 // pred_check_branch
          %274 = sbr.rel (%p272) target = $region28
        $region27: #{tpu_custom_call.1} parent=11 // pred_region
          _
        $region28: #{tpu_custom_call.1} parent=11 // pred_fallthru
          _
        // Predicated region
        $region29: #{tpu_custom_call.1} parent=11 // pred_check
          %p275 = pneg %p181
        $region30: #{tpu_custom_call.1} parent=11 // pred_check_branch
          %277 = sbr.rel (%p275) target = $region32
        $region31: #{tpu_custom_call.1} parent=11 // pred_region
          %s279 = ssub.s32 1024, 1024
          %280 = vsyncadd [#allocation9], %s279
          %s281 = sshll.u32 [#allocation10], 4
          %s282 = int_to_ptr.vmem [resolvable:$true] %s281
          %287 = dma.hbm_to_vmem [thread:$0]  %s6, 1024, %s282, [#allocation9], 64, 64, 4
        $region32: #{tpu_custom_call.1} parent=11 // pred_fallthru
          _
        // Predicated region
        $region33: #{tpu_custom_call.1} parent=11 // pred_check
          %p288 = pneg %p202
        $region34: #{tpu_custom_call.1} parent=11 // pred_check_branch
          %290 = sbr.rel (%p288) target = $region36
        $region35: #{tpu_custom_call.1} parent=11 // pred_region
          _
        $region36: #{tpu_custom_call.1} parent=11 // pred_fallthru
          _
      $region12: #{tpu_custom_call.1} parent=5 // pred_fallthru
        _
      %p291 = scmp.lt.s32.totalorder %s24, 2
      // Predicated region
      $region37: #{tpu_custom_call.1} parent=5 // pred_check
        %p292 = pneg %p291
      $region38: #{tpu_custom_call.1} parent=5 // pred_check_branch
        %294 = sbr.rel (%p292) target = $region40
      $region39: #{tpu_custom_call.1} parent=5 // pred_region
        // Predicated region
        $region41: #{tpu_custom_call.1} parent=39 // pred_check
          %p295 = pneg %p44
        $region42: #{tpu_custom_call.1} parent=39 // pred_check_branch
          %297 = sbr.rel (%p295) target = $region44
        $region43: #{tpu_custom_call.1} parent=39 // pred_region
          %s298 = sand.u32 %s34, 1
          %s299 = scalar_lea.sflag [#allocation3], %s298
          %s300 = sand.u32 %s34, 1
          %s301 = smul.addr %s300, 32
          %s302 = scalar_lea.vmem [#allocation2], %s301
          %s303 = smul.u32 4, %s24
          %s305 = ssub.s32 512, 512
          %306 = vsyncadd %s299, %s305
          %s307 = smul.addr %s303, 128
          %s308 = scalar_lea.hbm %s0, %s307
          %s309 = sshll.u32 %s302, 4
          %s310 = int_to_ptr.vmem [resolvable:$true] %s309
          %315 = dma.hbm_to_vmem [thread:$0]  %s308, 512, %s310, %s299, 128, 128, 8
        $region44: #{tpu_custom_call.1} parent=39 // pred_fallthru
          _
        // Predicated region
        $region45: #{tpu_custom_call.1} parent=39 // pred_check
          %p316 = pneg %p70
        $region46: #{tpu_custom_call.1} parent=39 // pred_check_branch
          %318 = sbr.rel (%p316) target = $region48
        $region47: #{tpu_custom_call.1} parent=39 // pred_region
          %s319 = sand.u32 %s24, 1
          %s320 = scalar_lea.sflag [#allocation6], %s319
          %s321 = sand.u32 %s60, 1
          %s322 = smul.addr %s321, 32
          %s323 = scalar_lea.vmem [#allocation5], %s322
          %s324 = smul.u32 4, %s24
          %s326 = ssub.s32 512, 512
          %327 = vsyncadd %s320, %s326
          %s328 = smul.addr %s324, 128
          %s329 = scalar_lea.hbm %s1, %s328
          %s330 = sshll.u32 %s323, 4
          %s331 = int_to_ptr.vmem [resolvable:$true] %s330
          %336 = dma.hbm_to_vmem [thread:$0]  %s329, 512, %s331, %s320, 128, 128, 8
        $region48: #{tpu_custom_call.1} parent=39 // pred_fallthru
          _
      $region40: #{tpu_custom_call.1} parent=5 // pred_fallthru
        _
      %p337 = scmp.le.s32.totalorder 1, %s24
      %p338 = scmp.lt.s32.totalorder %s24, 3
      %p339 = pnand %p337, %p338
      %p340 = pneg %p339
      // Predicated region
      $region49: #{tpu_custom_call.1} parent=5 // pred_check
        _
      $region50: #{tpu_custom_call.1} parent=5 // pred_check_branch
        %342 = sbr.rel (%p339) target = $region52
      $region51: #{tpu_custom_call.1} parent=5 // pred_region
        %s343 = ssub.s32 %s24, 1
        %s344 = sand.u32 %s37, 1
        %s345 = scalar_lea.sflag [#allocation3], %s344
        %s346 = sand.u32 %s37, 1
        %s347 = smul.addr %s346, 32
        %s348 = scalar_lea.vmem [#allocation2], %s347
        // Predicated region
        $region53: #{tpu_custom_call.1} parent=51 // pred_check
          %p349 = pneg %p50
        $region54: #{tpu_custom_call.1} parent=51 // pred_check_branch
          %351 = sbr.rel (%p349) target = $region56
        $region55: #{tpu_custom_call.1} parent=51 // pred_region
          %352 = dma.done %s345, 512
        $region56: #{tpu_custom_call.1} parent=51 // pred_fallthru
          _
        %s353 = sand.u32 %s29, 1
        %s354 = scalar_lea.sflag [#allocation6], %s353
        %s355 = sand.u32 %s63, 1
        %s356 = smul.addr %s355, 32
        %s357 = scalar_lea.vmem [#allocation5], %s356
        // Predicated region
        $region57: #{tpu_custom_call.1} parent=51 // pred_check
          %p358 = pneg %p76
        $region58: #{tpu_custom_call.1} parent=51 // pred_check_branch
          %360 = sbr.rel (%p358) target = $region60
        $region59: #{tpu_custom_call.1} parent=51 // pred_region
          %361 = dma.done %s354, 512
        $region60: #{tpu_custom_call.1} parent=51 // pred_fallthru
          _
        // Predicated region
        $region61: #{tpu_custom_call.1} parent=51 // pred_check
          %p362 = pneg %p97
        $region62: #{tpu_custom_call.1} parent=51 // pred_check_branch
          %364 = sbr.rel (%p362) target = $region64
        $region63: #{tpu_custom_call.1} parent=51 // pred_region
          %365 = dma.done [#allocation6], 2048
        $region64: #{tpu_custom_call.1} parent=51 // pred_fallthru
          _
        // Predicated region
        $region65: #{tpu_custom_call.1} parent=51 // pred_check
          %p366 = pneg %p139
        $region66: #{tpu_custom_call.1} parent=51 // pred_check_branch
          %368 = sbr.rel (%p366) target = $region68
        $region67: #{tpu_custom_call.1} parent=51 // pred_region
          %369 = dma.done [#allocation9], 1024
        $region68: #{tpu_custom_call.1} parent=51 // pred_fallthru
          _
        // Predicated region
        $region69: #{tpu_custom_call.1} parent=51 // pred_check
          %p370 = pneg %p181
        $region70: #{tpu_custom_call.1} parent=51 // pred_check_branch
          %372 = sbr.rel (%p370) target = $region72
        $region71: #{tpu_custom_call.1} parent=51 // pred_region
          %373 = dma.done [#allocation9], 1024
        $region72: #{tpu_custom_call.1} parent=51 // pred_fallthru
          _
        %s374 = sand.u32 %s37, 1
        %s375 = scalar_lea.sflag [#allocation3], %s374
        %s376 = sand.u32 %s37, 1
        %s377 = smul.addr %s376, 32
        %s378 = scalar_lea.vmem [#allocation2], %s377
        %p379 = pneg %p50
        %p380 = pneg %p47
        %s381 = sand.u32 %s29, 1
        %s382 = scalar_lea.sflag [#allocation6], %s381
        %s383 = sand.u32 %s63, 1
        %s384 = smul.addr %s383, 32
        %s385 = scalar_lea.vmem [#allocation5], %s384
        %p386 = pneg %p76
        %p387 = pneg %p73
        %p388 = pneg %p97
        %p389 = pneg %p94
        %p390 = pneg %p118
        %p391 = pneg %p115
        %p392 = pneg %p139
        %p393 = pneg %p136
        %p394 = pneg %p160
        %p395 = pneg %p157
        %p396 = pneg %p181
        %p397 = pneg %p178
        %p398 = pneg %p202
        %p399 = pneg %p199
        %p400 = pneg %p228
        %p401 = pneg %p225
        %s402 = sand.u32 %s215, 1
        %s403 = scalar_lea.sflag [#allocation4], %s402
        %s404 = sand.u32 %s215, 1
        %s405 = smul.addr %s404, 32
        %s406 = scalar_lea.vmem [#allocation11], %s405
        %s407 = smul.u32 4, %s29
        %s408 = smul.u32 4, %s29
        %s409 = smul.u32 4, %s29
        %v411 = vld [vmem:[%s357] sm:$0xff]
        %v412 = vld [vmem:[%s357 + $0x8] sm:$0xff]
        %v413 = vld [vmem:[%s357 + $0x10] sm:$0xff]
        %v414 = vld [vmem:[%s357 + $0x18] sm:$0xff]
        %v415 = vpack.c.bf16 %v412, %v411
        %v416 = vpack.c.bf16 %v414, %v413
        %v417 = vld [vmem:[#allocation7] sm:$0xf]
        %v418 = vld [vmem:[#allocation7 + $0x4] sm:$0xf]
        %v419 = vld [vmem:[#allocation7 + $0x8] sm:$0xf]
        %v420 = vld [vmem:[#allocation7 + $0xc] sm:$0xf]
        %v421 = vld [vmem:[#allocation7 + $0x10] sm:$0xf]
        %v422 = vld [vmem:[#allocation7 + $0x14] sm:$0xf]
        %v423 = vld [vmem:[#allocation7 + $0x18] sm:$0xf]
        %v424 = vld [vmem:[#allocation7 + $0x1c] sm:$0xf]
        %v425 = vld [vmem:[#allocation7 + $0x20] sm:$0xf]
        %v426 = vld [vmem:[#allocation7 + $0x24] sm:$0xf]
        %v427 = vld [vmem:[#allocation7 + $0x28] sm:$0xf]
        %v428 = vld [vmem:[#allocation7 + $0x2c] sm:$0xf]
        %v429 = vld [vmem:[#allocation7 + $0x30] sm:$0xf]
        %v430 = vld [vmem:[#allocation7 + $0x34] sm:$0xf]
        %v431 = vld [vmem:[#allocation7 + $0x38] sm:$0xf]
        %v432 = vld [vmem:[#allocation7 + $0x3c] sm:$0xf]
        %v433 = vld [vmem:[%s3] sm:$0x1]
        %v435 = vlaneseq
        %v436 = vshrl.u32 %v435, 7
        %v437 = vsub.s32 0, %v436
        %v438 = vrot.slane %v433, %v437
        %v456 = vunpack.c.l.b16 %v417
        %v457 = vunpack.c.l.b16 %v418
        %v458 = vunpack.c.l.b16 %v419
        %v459 = vunpack.c.l.b16 %v420
        %v460 = vunpack.c.l.b16 %v421
        %v461 = vunpack.c.l.b16 %v422
        %v462 = vunpack.c.l.b16 %v423
        %v463 = vunpack.c.l.b16 %v424
        %v464 = vunpack.c.l.b16 %v425
        %v465 = vunpack.c.l.b16 %v426
        %v466 = vunpack.c.l.b16 %v427
        %v467 = vunpack.c.l.b16 %v428
        %v468 = vunpack.c.l.b16 %v429
        %v469 = vunpack.c.l.b16 %v430
        %v470 = vunpack.c.l.b16 %v431
        %v471 = vunpack.c.l.b16 %v432
        %v472 = vpack.c.b16 %v457, %v456
        %v473 = vpack.c.b16 %v459, %v458
        %v474 = vpack.c.b16 %v461, %v460
        %v475 = vpack.c.b16 %v463, %v462
        %v476 = vpack.c.b16 %v465, %v464
        %v477 = vpack.c.b16 %v467, %v466
        %v478 = vpack.c.b16 %v469, %v468
        %v479 = vpack.c.b16 %v471, %v470
        %488 = vmatprep.subr.bf16.mxu0 0
        %489 = vmatpush1.bf16.msra.mxu0 %v472
        %490 = vmatprep.subr.bf16.mxu0 0
        %491 = vmatpush1.bf16.msra.mxu0 %v473
        %492 = vmatprep.subr.bf16.mxu0 0
        %493 = vmatpush1.bf16.msra.mxu0 %v474
        %494 = vmatprep.subr.bf16.mxu0 0
        %495 = vmatpush1.bf16.msra.mxu0 %v475
        %496 = vmatprep.subr.bf16.mxu0 0
        %497 = vmatpush1.bf16.msra.mxu0 %v476
        %498 = vmatprep.subr.bf16.mxu0 0
        %499 = vmatpush1.bf16.msra.mxu0 %v477
        %500 = vmatprep.subr.bf16.mxu0 0
        %501 = vmatpush1.bf16.msra.mxu0 %v478
        %502 = vmatprep.subr.bf16.mxu0 0
        %503 = vmatpush1.bf16.msra.mxu0 %v479
        %504 = vmatprep.subr.bf16.mxu0 0
        %505 = vmatpush1.bf16.msra.mxu0 0
        %506 = vmatprep.subr.bf16.mxu0 0
        %507 = vmatpush1.bf16.msra.mxu0 0
        %508 = vmatprep.subr.bf16.mxu0 0
        %509 = vmatpush1.bf16.msra.mxu0 0
        %510 = vmatprep.subr.bf16.mxu0 0
        %511 = vmatpush1.bf16.msra.mxu0 0
        %512 = vmatprep.subr.bf16.mxu0 0
        %513 = vmatpush1.bf16.msra.mxu0 0
        %514 = vmatprep.subr.bf16.mxu0 0
        %515 = vmatpush1.bf16.msra.mxu0 0
        %516 = vmatprep.subr.bf16.mxu0 0
        %517 = vmatpush1.bf16.msra.mxu0 0
        %518 = vmatprep.subr.bf16.mxu0 0
        %519 = vmatpush1.bf16.msra.mxu0 0
        %520 = vmatprep.mubr.bf16.mxu0 0
        %521 = vmatmul.mubr.bf16.gmra.mrb[0].mxu0 %v415
        %v522 = vpop.f32.mrb[0].mxu0
        %v523 = vadd.f32 %v438, %v522
        %v524 = vpop.f32.mrb[0].mxu0
        %v525 = vpop.f32.mrb[0].mxu0
        %v526 = vadd.f32 %v438, %v525
        %v527 = vpop.f32.mrb[0].mxu0
        %528 = vmatprep.mubr.bf16.mxu0 0
        %529 = vmatmul.mubr.bf16.gmra.mrb[0].mxu0 %v416
        %v530 = vpop.f32.mrb[0].mxu0
        %v531 = vadd.f32 %v438, %v530
        %v532 = vpop.f32.mrb[0].mxu0
        %v533 = vpop.f32.mrb[0].mxu0
        %v534 = vadd.f32 %v438, %v533
        %v535 = vpop.f32.mrb[0].mxu0
        %536 = vdwg.mxu0
        %v537 = vmax.f32 %v523, 0.0
        %v538 = vmax.f32 %v526, 0.0
        %v539 = vmax.f32 %v531, 0.0
        %v540 = vmax.f32 %v534, 0.0
        %v541 = vpack.c.bf16 %v538, %v537
        %v542 = vpack.c.bf16 %v540, %v539
        %s543 = scalar_lea.vmem [#allocation7], 64
        %v544 = vld [vmem:[%s543] sm:$0xf]
        %v545 = vld [vmem:[%s543 + $0x4] sm:$0xf]
        %v546 = vld [vmem:[%s543 + $0x8] sm:$0xf]
        %v547 = vld [vmem:[%s543 + $0xc] sm:$0xf]
        %v548 = vld [vmem:[%s543 + $0x10] sm:$0xf]
        %v549 = vld [vmem:[%s543 + $0x14] sm:$0xf]
        %v550 = vld [vmem:[%s543 + $0x18] sm:$0xf]
        %v551 = vld [vmem:[%s543 + $0x1c] sm:$0xf]
        %v552 = vld [vmem:[%s543 + $0x20] sm:$0xf]
        %v553 = vld [vmem:[%s543 + $0x24] sm:$0xf]
        %v554 = vld [vmem:[%s543 + $0x28] sm:$0xf]
        %v555 = vld [vmem:[%s543 + $0x2c] sm:$0xf]
        %v556 = vld [vmem:[%s543 + $0x30] sm:$0xf]
        %v557 = vld [vmem:[%s543 + $0x34] sm:$0xf]
        %v558 = vld [vmem:[%s543 + $0x38] sm:$0xf]
        %v559 = vld [vmem:[%s543 + $0x3c] sm:$0xf]
        %s560 = scalar_lea.vmem %s3, 1
        %v561 = vld [vmem:[%s560] sm:$0x1]
        %v563 = vlaneseq
        %v564 = vshrl.u32 %v563, 7
        %v565 = vsub.s32 0, %v564
        %v566 = vrot.slane %v561, %v565
        %v584 = vunpack.c.l.b16 %v544
        %v585 = vunpack.c.l.b16 %v545
        %v586 = vunpack.c.l.b16 %v546
        %v587 = vunpack.c.l.b16 %v547
        %v588 = vunpack.c.l.b16 %v548
        %v589 = vunpack.c.l.b16 %v549
        %v590 = vunpack.c.l.b16 %v550
        %v591 = vunpack.c.l.b16 %v551
        %v592 = vunpack.c.l.b16 %v552
        %v593 = vunpack.c.l.b16 %v553
        %v594 = vunpack.c.l.b16 %v554
        %v595 = vunpack.c.l.b16 %v555
        %v596 = vunpack.c.l.b16 %v556
        %v597 = vunpack.c.l.b16 %v557
        %v598 = vunpack.c.l.b16 %v558
        %v599 = vunpack.c.l.b16 %v559
        %v600 = vpack.c.b16 %v585, %v584
        %v601 = vpack.c.b16 %v587, %v586
        %v602 = vpack.c.b16 %v589, %v588
        %v603 = vpack.c.b16 %v591, %v590
        %v604 = vpack.c.b16 %v593, %v592
        %v605 = vpack.c.b16 %v595, %v594
        %v606 = vpack.c.b16 %v597, %v596
        %v607 = vpack.c.b16 %v599, %v598
        %616 = vmatprep.subr.bf16.mxu0 0
        %617 = vmatpush1.bf16.msra.mxu0 %v600
        %618 = vmatprep.subr.bf16.mxu0 0
        %619 = vmatpush1.bf16.msra.mxu0 %v601
        %620 = vmatprep.subr.bf16.mxu0 0
        %621 = vmatpush1.bf16.msra.mxu0 %v602
        %622 = vmatprep.subr.bf16.mxu0 0
        %623 = vmatpush1.bf16.msra.mxu0 %v603
        %624 = vmatprep.subr.bf16.mxu0 0
        %625 = vmatpush1.bf16.msra.mxu0 %v604
        %626 = vmatprep.subr.bf16.mxu0 0
        %627 = vmatpush1.bf16.msra.mxu0 %v605
        %628 = vmatprep.subr.bf16.mxu0 0
        %629 = vmatpush1.bf16.msra.mxu0 %v606
        %630 = vmatprep.subr.bf16.mxu0 0
        %631 = vmatpush1.bf16.msra.mxu0 %v607
        %632 = vmatprep.subr.bf16.mxu0 0
        %633 = vmatpush1.bf16.msra.mxu0 0
        %634 = vmatprep.subr.bf16.mxu0 0
        %635 = vmatpush1.bf16.msra.mxu0 0
        %636 = vmatprep.subr.bf16.mxu0 0
        %637 = vmatpush1.bf16.msra.mxu0 0
        %638 = vmatprep.subr.bf16.mxu0 0
        %639 = vmatpush1.bf16.msra.mxu0 0
        %640 = vmatprep.subr.bf16.mxu0 0
        %641 = vmatpush1.bf16.msra.mxu0 0
        %642 = vmatprep.subr.bf16.mxu0 0
        %643 = vmatpush1.bf16.msra.mxu0 0
        %644 = vmatprep.subr.bf16.mxu0 0
        %645 = vmatpush1.bf16.msra.mxu0 0
        %646 = vmatprep.subr.bf16.mxu0 0
        %647 = vmatpush1.bf16.msra.mxu0 0
        %648 = vmatprep.mubr.bf16.mxu0 0
        %649 = vmatmul.mubr.bf16.gmra.mrb[0].mxu0 %v541
        %v650 = vpop.f32.mrb[0].mxu0
        %v651 = vadd.f32 %v566, %v650
        %v652 = vpop.f32.mrb[0].mxu0
        %v653 = vpop.f32.mrb[0].mxu0
        %v654 = vadd.f32 %v566, %v653
        %v655 = vpop.f32.mrb[0].mxu0
        %656 = vmatprep.mubr.bf16.mxu0 0
        %657 = vmatmul.mubr.bf16.gmra.mrb[0].mxu0 %v542
        %v658 = vpop.f32.mrb[0].mxu0
        %v659 = vadd.f32 %v566, %v658
        %v660 = vpop.f32.mrb[0].mxu0
        %v661 = vpop.f32.mrb[0].mxu0
        %v662 = vadd.f32 %v566, %v661
        %v663 = vpop.f32.mrb[0].mxu0
        %664 = vdwg.mxu0
        %v665 = vmax.f32 %v651, 0.0
        %v666 = vmax.f32 %v654, 0.0
        %v667 = vmax.f32 %v659, 0.0
        %v668 = vmax.f32 %v662, 0.0
        %v669 = vpack.c.bf16 %v666, %v665
        %v670 = vpack.c.bf16 %v668, %v667
        %v671 = vld [vmem:[#allocation8] sm:$0xf]
        %v672 = vld [vmem:[#allocation8 + $0x4] sm:$0xf]
        %v673 = vld [vmem:[#allocation8 + $0x8] sm:$0xf]
        %v674 = vld [vmem:[#allocation8 + $0xc] sm:$0xf]
        %v675 = vld [vmem:[#allocation8 + $0x10] sm:$0xf]
        %v676 = vld [vmem:[#allocation8 + $0x14] sm:$0xf]
        %v677 = vld [vmem:[#allocation8 + $0x18] sm:$0xf]
        %v678 = vld [vmem:[#allocation8 + $0x1c] sm:$0xf]
        %v679 = vld [vmem:[#allocation8 + $0x20] sm:$0xf]
        %v680 = vld [vmem:[#allocation8 + $0x24] sm:$0xf]
        %v681 = vld [vmem:[#allocation8 + $0x28] sm:$0xf]
        %v682 = vld [vmem:[#allocation8 + $0x2c] sm:$0xf]
        %v683 = vld [vmem:[#allocation8 + $0x30] sm:$0xf]
        %v684 = vld [vmem:[#allocation8 + $0x34] sm:$0xf]
        %v685 = vld [vmem:[#allocation8 + $0x38] sm:$0xf]
        %v686 = vld [vmem:[#allocation8 + $0x3c] sm:$0xf]
        %v687 = vld [vmem:[%s5] sm:$0x1]
        %v689 = vlaneseq
        %v690 = vshrl.u32 %v689, 7
        %v691 = vsub.s32 0, %v690
        %v692 = vrot.slane %v687, %v691
        %v710 = vunpack.c.l.b16 %v671
        %v711 = vunpack.c.l.b16 %v672
        %v712 = vunpack.c.l.b16 %v673
        %v713 = vunpack.c.l.b16 %v674
        %v714 = vunpack.c.l.b16 %v675
        %v715 = vunpack.c.l.b16 %v676
        %v716 = vunpack.c.l.b16 %v677
        %v717 = vunpack.c.l.b16 %v678
        %v718 = vunpack.c.l.b16 %v679
        %v719 = vunpack.c.l.b16 %v680
        %v720 = vunpack.c.l.b16 %v681
        %v721 = vunpack.c.l.b16 %v682
        %v722 = vunpack.c.l.b16 %v683
        %v723 = vunpack.c.l.b16 %v684
        %v724 = vunpack.c.l.b16 %v685
        %v725 = vunpack.c.l.b16 %v686
        %v726 = vpack.c.b16 %v711, %v710
        %v727 = vpack.c.b16 %v713, %v712
        %v728 = vpack.c.b16 %v715, %v714
        %v729 = vpack.c.b16 %v717, %v716
        %v730 = vpack.c.b16 %v719, %v718
        %v731 = vpack.c.b16 %v721, %v720
        %v732 = vpack.c.b16 %v723, %v722
        %v733 = vpack.c.b16 %v725, %v724
        %742 = vmatprep.subr.bf16.mxu0 0
        %743 = vmatpush1.bf16.msra.mxu0 %v726
        %744 = vmatprep.subr.bf16.mxu0 0
        %745 = vmatpush1.bf16.msra.mxu0 %v727
        %746 = vmatprep.subr.bf16.mxu0 0
        %747 = vmatpush1.bf16.msra.mxu0 %v728
        %748 = vmatprep.subr.bf16.mxu0 0
        %749 = vmatpush1.bf16.msra.mxu0 %v729
        %750 = vmatprep.subr.bf16.mxu0 0
        %751 = vmatpush1.bf16.msra.mxu0 %v730
        %752 = vmatprep.subr.bf16.mxu0 0
        %753 = vmatpush1.bf16.msra.mxu0 %v731
        %754 = vmatprep.subr.bf16.mxu0 0
        %755 = vmatpush1.bf16.msra.mxu0 %v732
        %756 = vmatprep.subr.bf16.mxu0 0
        %757 = vmatpush1.bf16.msra.mxu0 %v733
        %758 = vmatprep.subr.bf16.mxu0 0
        %759 = vmatpush1.bf16.msra.mxu0 0
        %760 = vmatprep.subr.bf16.mxu0 0
        %761 = vmatpush1.bf16.msra.mxu0 0
        %762 = vmatprep.subr.bf16.mxu0 0
        %763 = vmatpush1.bf16.msra.mxu0 0
        %764 = vmatprep.subr.bf16.mxu0 0
        %765 = vmatpush1.bf16.msra.mxu0 0
        %766 = vmatprep.subr.bf16.mxu0 0
        %767 = vmatpush1.bf16.msra.mxu0 0
        %768 = vmatprep.subr.bf16.mxu0 0
        %769 = vmatpush1.bf16.msra.mxu0 0
        %770 = vmatprep.subr.bf16.mxu0 0
        %771 = vmatpush1.bf16.msra.mxu0 0
        %772 = vmatprep.subr.bf16.mxu0 0
        %773 = vmatpush1.bf16.msra.mxu0 0
        %774 = vmatprep.mubr.bf16.mxu0 0
        %775 = vmatmul.mubr.bf16.gmra.mrb[0].mxu0 %v669
        %v776 = vpop.f32.mrb[0].mxu0
        %v777 = vadd.f32 %v692, %v776
        %v778 = vpop.f32.mrb[0].mxu0
        %v779 = vpop.f32.mrb[0].mxu0
        %v780 = vadd.f32 %v692, %v779
        %v781 = vpop.f32.mrb[0].mxu0
        %782 = vmatprep.mubr.bf16.mxu0 0
        %783 = vmatmul.mubr.bf16.gmra.mrb[0].mxu0 %v670
        %v784 = vpop.f32.mrb[0].mxu0
        %v785 = vadd.f32 %v692, %v784
        %v786 = vpop.f32.mrb[0].mxu0
        %v787 = vpop.f32.mrb[0].mxu0
        %v788 = vadd.f32 %v692, %v787
        %v789 = vpop.f32.mrb[0].mxu0
        %790 = vdwg.mxu0
        %v791 = vxor.u32 %v777, 2147483648
        %v792 = vxor.u32 %v780, 2147483648
        %v793 = vxor.u32 %v785, 2147483648
        %v794 = vxor.u32 %v788, 2147483648
        %v795 = vmul.f32 %v791, 1.442695
        %v796 = vpow.pop %v795
        %v797 = vmul.f32 %v792, 1.442695
        %v798 = vpow.pop %v797
        %v799 = vmul.f32 %v793, 1.442695
        %v800 = vpow.pop %v799
        %v801 = vmul.f32 %v794, 1.442695
        %v802 = vpow.pop %v801
        %v803 = vadd.f32 %v796, 1.0
        %v804 = vadd.f32 %v798, 1.0
        %v805 = vadd.f32 %v800, 1.0
        %v806 = vadd.f32 %v802, 1.0
        %v807 = vrcp.pop %v803
        %v808 = vmul.f32 1.0, %v807
        %v809 = vrcp.pop %v804
        %v810 = vmul.f32 1.0, %v809
        %v811 = vrcp.pop %v805
        %v812 = vmul.f32 1.0, %v811
        %v813 = vrcp.pop %v806
        %v814 = vmul.f32 1.0, %v813
        %v815 = vld [vmem:[#allocation10] sm:$0xf]
        %v816 = vld [vmem:[#allocation10 + $0x4] sm:$0xf]
        %v817 = vld [vmem:[#allocation10 + $0x8] sm:$0xf]
        %v818 = vld [vmem:[#allocation10 + $0xc] sm:$0xf]
        %v819 = vld [vmem:[#allocation10 + $0x10] sm:$0xf]
        %v820 = vld [vmem:[#allocation10 + $0x14] sm:$0xf]
        %v821 = vld [vmem:[#allocation10 + $0x18] sm:$0xf]
        %v822 = vld [vmem:[#allocation10 + $0x1c] sm:$0xf]
        %v823 = vld [vmem:[#allocation10 + $0x20] sm:$0xf]
        %v824 = vld [vmem:[#allocation10 + $0x24] sm:$0xf]
        %v825 = vld [vmem:[#allocation10 + $0x28] sm:$0xf]
        %v826 = vld [vmem:[#allocation10 + $0x2c] sm:$0xf]
        %v827 = vld [vmem:[#allocation10 + $0x30] sm:$0xf]
        %v828 = vld [vmem:[#allocation10 + $0x34] sm:$0xf]
        %v829 = vld [vmem:[#allocation10 + $0x38] sm:$0xf]
        %v830 = vld [vmem:[#allocation10 + $0x3c] sm:$0xf]
        %v831 = vld [vmem:[%s7] sm:$0x1]
        %v833 = vlaneseq
        %v834 = vshrl.u32 %v833, 7
        %v835 = vsub.s32 0, %v834
        %v836 = vrot.slane %v831, %v835
        %v854 = vunpack.c.l.b16 %v815
        %v855 = vunpack.c.l.b16 %v816
        %v856 = vunpack.c.l.b16 %v817
        %v857 = vunpack.c.l.b16 %v818
        %v858 = vunpack.c.l.b16 %v819
        %v859 = vunpack.c.l.b16 %v820
        %v860 = vunpack.c.l.b16 %v821
        %v861 = vunpack.c.l.b16 %v822
        %v862 = vunpack.c.l.b16 %v823
        %v863 = vunpack.c.l.b16 %v824
        %v864 = vunpack.c.l.b16 %v825
        %v865 = vunpack.c.l.b16 %v826
        %v866 = vunpack.c.l.b16 %v827
        %v867 = vunpack.c.l.b16 %v828
        %v868 = vunpack.c.l.b16 %v829
        %v869 = vunpack.c.l.b16 %v830
        %v870 = vpack.c.b16 %v855, %v854
        %v871 = vpack.c.b16 %v857, %v856
        %v872 = vpack.c.b16 %v859, %v858
        %v873 = vpack.c.b16 %v861, %v860
        %v874 = vpack.c.b16 %v863, %v862
        %v875 = vpack.c.b16 %v865, %v864
        %v876 = vpack.c.b16 %v867, %v866
        %v877 = vpack.c.b16 %v869, %v868
        %886 = vmatprep.subr.bf16.mxu0 0
        %887 = vmatpush1.bf16.msra.mxu0 %v870
        %888 = vmatprep.subr.bf16.mxu0 0
        %889 = vmatpush1.bf16.msra.mxu0 %v871
        %890 = vmatprep.subr.bf16.mxu0 0
        %891 = vmatpush1.bf16.msra.mxu0 %v872
        %892 = vmatprep.subr.bf16.mxu0 0
        %893 = vmatpush1.bf16.msra.mxu0 %v873
        %894 = vmatprep.subr.bf16.mxu0 0
        %895 = vmatpush1.bf16.msra.mxu0 %v874
        %896 = vmatprep.subr.bf16.mxu0 0
        %897 = vmatpush1.bf16.msra.mxu0 %v875
        %898 = vmatprep.subr.bf16.mxu0 0
        %899 = vmatpush1.bf16.msra.mxu0 %v876
        %900 = vmatprep.subr.bf16.mxu0 0
        %901 = vmatpush1.bf16.msra.mxu0 %v877
        %902 = vmatprep.subr.bf16.mxu0 0
        %903 = vmatpush1.bf16.msra.mxu0 0
        %904 = vmatprep.subr.bf16.mxu0 0
        %905 = vmatpush1.bf16.msra.mxu0 0
        %906 = vmatprep.subr.bf16.mxu0 0
        %907 = vmatpush1.bf16.msra.mxu0 0
        %908 = vmatprep.subr.bf16.mxu0 0
        %909 = vmatpush1.bf16.msra.mxu0 0
        %910 = vmatprep.subr.bf16.mxu0 0
        %911 = vmatpush1.bf16.msra.mxu0 0
        %912 = vmatprep.subr.bf16.mxu0 0
        %913 = vmatpush1.bf16.msra.mxu0 0
        %914 = vmatprep.subr.bf16.mxu0 0
        %915 = vmatpush1.bf16.msra.mxu0 0
        %916 = vmatprep.subr.bf16.mxu0 0
        %917 = vmatpush1.bf16.msra.mxu0 0
        %918 = vmatprep.mubr.bf16.mxu0 0
        %919 = vmatmul.mubr.bf16.gmra.mrb[0].mxu0 %v669
        %v920 = vpop.f32.mrb[0].mxu0
        %v921 = vadd.f32 %v836, %v920
        %v922 = vpop.f32.mrb[0].mxu0
        %v923 = vpop.f32.mrb[0].mxu0
        %v924 = vadd.f32 %v836, %v923
        %v925 = vpop.f32.mrb[0].mxu0
        %926 = vmatprep.mubr.bf16.mxu0 0
        %927 = vmatmul.mubr.bf16.gmra.mrb[0].mxu0 %v670
        %v928 = vpop.f32.mrb[0].mxu0
        %v929 = vadd.f32 %v836, %v928
        %v930 = vpop.f32.mrb[0].mxu0
        %v931 = vpop.f32.mrb[0].mxu0
        %v932 = vadd.f32 %v836, %v931
        %v933 = vpop.f32.mrb[0].mxu0
        %934 = vdwg.mxu0
        %v935 = vld [vmem:[%s348] sm:$0xff]
        %v936 = vld [vmem:[%s348 + $0x8] sm:$0xff]
        %v937 = vld [vmem:[%s348 + $0x10] sm:$0xff]
        %v938 = vld [vmem:[%s348 + $0x18] sm:$0xff]
        %v939 = vmul.f32 %v808, %v935
        %v940 = vmul.f32 %v810, %v936
        %v941 = vmul.f32 %v812, %v937
        %v942 = vmul.f32 %v814, %v938
        %v943 = vadd.f32 %v939, %v921
        %v944 = vadd.f32 %v940, %v924
        %v945 = vadd.f32 %v941, %v929
        %v946 = vadd.f32 %v942, %v932
        %947 = vst [vmem:[%s406] sm:$0xff] %v943
        %948 = vst [vmem:[%s406 + $0x8] sm:$0xff] %v944
        %949 = vst [vmem:[%s406 + $0x10] sm:$0xff] %v945
        %950 = vst [vmem:[%s406 + $0x18] sm:$0xff] %v946
        %s951 = sand.u32 %s215, 1
        %s952 = scalar_lea.sflag [#allocation4], %s951
        %s953 = sand.u32 %s215, 1
        %s954 = smul.addr %s953, 32
        %s955 = scalar_lea.vmem [#allocation11], %s954
        // Predicated region
        $region73: #{tpu_custom_call.1} parent=51 // pred_check
          %p956 = pneg %p225
        $region74: #{tpu_custom_call.1} parent=51 // pred_check_branch
          %958 = sbr.rel (%p956) target = $region76
        $region75: #{tpu_custom_call.1} parent=51 // pred_region
          %s959 = smul.u32 4, %s29
          %s961 = ssub.s32 512, 512
          %962 = vsyncadd %s952, %s961
          %s963 = smul.addr %s959, 128
          %s964 = scalar_lea.hbm %s8, %s963
          %s965 = sshll.u32 %s955, 4
          %s966 = int_to_ptr.vmem [resolvable:$true] %s965
          %971 = dma.vmem_to_hbm [thread:$0]  %s966, 512, %s964, %s952, 128, 128, 8
        $region76: #{tpu_custom_call.1} parent=51 // pred_fallthru
          _
      $region52: #{tpu_custom_call.1} parent=5 // pred_fallthru
        _
      %p972 = scmp.le.s32.totalorder 2, %s24
      // Predicated region
      $region77: #{tpu_custom_call.1} parent=5 // pred_check
        %p973 = pneg %p972
      $region78: #{tpu_custom_call.1} parent=5 // pred_check_branch
        %975 = sbr.rel (%p973) target = $region80
      $region79: #{tpu_custom_call.1} parent=5 // pred_region
        %s976 = ssub.s32 %s24, 2
        // Predicated region
        $region81: #{tpu_custom_call.1} parent=79 // pred_check
          %p977 = pneg %p231
        $region82: #{tpu_custom_call.1} parent=79 // pred_check_branch
          %979 = sbr.rel (%p977) target = $region84
        $region83: #{tpu_custom_call.1} parent=79 // pred_region
          %s980 = sand.u32 %s216, 1
          %s981 = scalar_lea.sflag [#allocation4], %s980
          %s982 = sand.u32 %s216, 1
          %s983 = smul.addr %s982, 32
          %s984 = scalar_lea.vmem [#allocation11], %s983
          %985 = dma.done %s981, 512
        $region84: #{tpu_custom_call.1} parent=79 // pred_fallthru
          _
      $region80: #{tpu_custom_call.1} parent=5 // pred_fallthru
        _
    $region6: #{tpu_custom_call.1} parent=1 // loop_footer
      %s28 = sadd.s32 1, %s24
    $region7: #{tpu_custom_call.1} parent=1 // loop_footer_branch
      %23 = sbr.rel target = $region3
    $region8: #{tpu_custom_call.1} parent=1 // loop_exit
      _
    %986 = vsyncpa [#allocation3], 1
    %s987 = scalar_lea.sflag [#allocation3], 1
    %988 = vsyncpa %s987, 1
    %989 = vsyncpa [#allocation6], 1
    %s990 = scalar_lea.sflag [#allocation6], 1
    %991 = vsyncpa %s990, 1
    %992 = vsyncpa [#allocation9], 1
    %993 = vsyncpa [#allocation4], 1
    %s994 = scalar_lea.sflag [#allocation4], 1
    %995 = vsyncpa %s994, 1

</llo_original>
